<compile_context>
chip_gen: v5e
topology: v5e:2x2
jax: 0.10.0
libtpu: 0.0.40
codegen_flags: <defaults>
</compile_context>

<pallas_src>
import functools

import jax
import jax.numpy as jnp
from jax.experimental import pallas as pl
from jax.experimental.pallas import tpu as pltpu

_BN_EPS = 1e-5


def _round_up(x, m):
    return (x + m - 1) // m * m


# --------------------------------------------------------------------------
# Pass 1: conv (k shifted matmuls) + per-batch per-channel sum / sumsq
# --------------------------------------------------------------------------
def _conv_stats_kernel(x_ref, w_ref, y_ref, sum_ref, ssq_ref, *,
                       tile_l, halo, k, l_valid, mask_rows):
    """Per grid step (n = batch, i = row tile):
       x_ref:   (Lin, C_in)        padded input of batch n (resident over i), bf16
       w_ref:   (k, C_in, C_out_p) per-tap weight matrices (resident), bf16
       y_ref:   (tile_l, C_out_p)  pre-BN conv output tile, f32
       sum_ref: (1, C_out_p)       per-batch channel sum   (resident over i), f32
       ssq_ref: (1, C_out_p)       per-batch channel sumsq (resident over i), f32
    """
    i = pl.program_id(1)

    @pl.when(i == 0)
    def _init():
        sum_ref[...] = jnp.zeros_like(sum_ref)
        ssq_ref[...] = jnp.zeros_like(ssq_ref)

    # Aligned window: this tile's rows plus the conv halo (halo multiple of 8).
    row0 = pl.multiple_of(i * tile_l, 8)
    xw = x_ref[pl.ds(row0, tile_l + halo), :]

    # Conv1d as k accumulated matmuls over statically shifted row windows.
    acc = jnp.zeros(y_ref.shape, jnp.float32)
    for t in range(k):                                   # static unroll over taps
        acc = acc + jnp.dot(xw[t:t + tile_l, :], w_ref[t],
                            preferred_element_type=jnp.float32)
    y_ref[...] = acc

    # Batch statistics: mask out row-padding (rows >= L) of the last tile.
    if mask_rows:
        rows = jax.lax.broadcasted_iota(jnp.int32, acc.shape, 0) + row0
        acc = jnp.where(rows < l_valid, acc, 0.0)
    sum_ref[...] += jnp.sum(acc, axis=0, keepdims=True)
    ssq_ref[...] += jnp.sum(acc * acc, axis=0, keepdims=True)


# --------------------------------------------------------------------------
# Pass 2: fused BN epilogue  o = y * scale + shift  (scale/shift precomputed)
# --------------------------------------------------------------------------
def _scale_shift_kernel(y_ref, scale_ref, shift_ref, o_ref):
    o_ref[...] = y_ref[...] * scale_ref[...] + shift_ref[...]


# --------------------------------------------------------------------------
# Tile sizing against a conservative VMEM budget (fits default scoped limits).
# --------------------------------------------------------------------------
def _working_set_bytes(lin, tile_l, c_in, c_out_pad, k):
    return (2 * lin * c_in * 2                  # padded input slab, bf16, 2-buffered
            + 2 * k * c_in * c_out_pad * 2      # tap weights, bf16, 2-buffered
            + 6 * tile_l * c_out_pad * 4        # y tiles (pass-1 out / pass-2 in+out)
            + 16 * c_out_pad * 4)               # stats / scale / shift


def _derive_tile_l(L, c_in, c_out_pad, k, halo, budget_bytes=12 << 20):
    l8 = _round_up(L, 8)
    candidates = sorted({min(l8, 1024), 1024, 512, 256, 128, 64, 32, 16, 8},
                        reverse=True)
    for tile in candidates:
        if tile > l8:
            continue
        n_tiles = pl.cdiv(L, tile)
        lin = n_tiles * tile + halo
        if _working_set_bytes(lin, tile, c_in, c_out_pad, k) <= budget_bytes:
            return tile
    return 8


# --------------------------------------------------------------------------
# Wrapper
# --------------------------------------------------------------------------
@functools.partial(jax.jit, static_argnames=("kernel_size", "tile_l"))
def cnbn_forward(x, weight, bias, gamma, beta, *, kernel_size, tile_l=None):
    """x: (N, C_in, L) float32 (PyTorch NCL). Returns (N, C_out, L) float32.

    `bias` is accepted for API parity with the PyTorch module but not applied:
    under training-mode BatchNorm a per-channel constant cancels exactly in
    (y - mean), so applying it would be wasted VPU work and an extra DMA.
    """
    del bias
    N, C_in, L = x.shape
    C_out = weight.shape[0]
    k = kernel_size
    assert k % 2 == 1, "kernel size must be odd for 'same' padding"
    pad = (k - 1) // 2

    C_out_pad = _round_up(C_out, 128)                 # lane-dense output stores
    halo = _round_up(k - 1, 8) if k > 1 else 0
    if tile_l is None:
        tile_l = _derive_tile_l(L, C_in, C_out_pad, k, halo)
    else:
        tile_l = max(8, min(_round_up(tile_l, 8), _round_up(L, 8)))
    n_tiles = pl.cdiv(L, tile_l)
    Lt = n_tiles * tile_l                             # row-padded length
    Lin = Lt + halo                                   # padded input length per batch

    # --- layout glue (XLA): NCL -> NLC, conv 'same' + tile/halo zero padding,
    #     per-tap weight matrices, bf16 casts for the MXU. ---
    x_nlc = jnp.transpose(x, (0, 2, 1))                                 # (N, L, C_in)
    x_pad = jnp.pad(x_nlc, ((0, 0), (pad, Lin - pad - L), (0, 0))).astype(jnp.bfloat16)
    w_taps = jnp.transpose(weight, (2, 1, 0))                           # (k, C_in, C_out)
    w_taps = jnp.pad(w_taps, ((0, 0), (0, 0), (0, C_out_pad - C_out))).astype(jnp.bfloat16)

    vmem_need = _working_set_bytes(Lin, tile_l, C_in, C_out_pad, k)
    vmem_limit = int(min(max(2 * vmem_need, 32 << 20), 64 << 20))

    cost1 = pl.CostEstimate(
        flops=int(2 * N * Lt * k * C_in * C_out_pad),
        transcendentals=0,
        bytes_accessed=int(x_pad.size * 2 + w_taps.size * 2
                           + N * Lt * C_out_pad * 4 + 2 * N * C_out_pad * 4))

    # ---- pass 1: conv + per-batch per-channel sum / sumsq ----
    y, ssum, ssq = pl.pallas_call(
        functools.partial(_conv_stats_kernel, tile_l=tile_l, halo=halo, k=k,
                          l_valid=L, mask_rows=(Lt != L)),
        grid_spec=pltpu.PrefetchScalarGridSpec(
            num_scalar_prefetch=0,
            grid=(N, n_tiles),                        # batch outer, row tiles inner
            in_specs=(
                # whole padded batch stays resident across the inner tile axis
                pl.BlockSpec((None, Lin, C_in), lambda n, i: (n, 0, 0)),
                pl.BlockSpec((k, C_in, C_out_pad), lambda n, i: (0, 0, 0)),
            ),
            out_specs=(
                pl.BlockSpec((None, tile_l, C_out_pad), lambda n, i: (n, i, 0)),
                pl.BlockSpec((None, 1, C_out_pad), lambda n, i: (n, 0, 0)),
                pl.BlockSpec((None, 1, C_out_pad), lambda n, i: (n, 0, 0)),
            ),
        ),
        out_shape=(
            jax.ShapeDtypeStruct((N, Lt, C_out_pad), jnp.float32),
            jax.ShapeDtypeStruct((N, 1, C_out_pad), jnp.float32),
            jax.ShapeDtypeStruct((N, 1, C_out_pad), jnp.float32),
        ),
        compiler_params=pltpu.CompilerParams(
            # per-batch stat blocks are resident only across the inner (row) axis,
            # so the batch axis can be megacore-parallel.
            dimension_semantics=("parallel", "arbitrary"),
            vmem_limit_bytes=vmem_limit,
        ),
        cost_estimate=cost1,
    )(x_pad, w_taps)

    # ---- tiny per-channel BN folding (XLA, (1, C_out_pad) arrays) ----
    count = float(N * L)
    mean = jnp.sum(ssum, axis=0) / count                               # (1, C_out_pad)
    var = jnp.maximum(jnp.sum(ssq, axis=0) / count - mean * mean, 0.0)
    gamma_p = jnp.pad(gamma.astype(jnp.float32), (0, C_out_pad - C_out)).reshape(1, C_out_pad)
    beta_p = jnp.pad(beta.astype(jnp.float32), (0, C_out_pad - C_out)).reshape(1, C_out_pad)
    scale = gamma_p * jax.lax.rsqrt(var + _BN_EPS)
    shift = beta_p - mean * scale

    cost2 = pl.CostEstimate(
        flops=int(2 * N * Lt * C_out_pad),
        transcendentals=0,
        bytes_accessed=int(2 * N * Lt * C_out_pad * 4))

    # ---- pass 2: fused scale/shift normalisation (fully parallel, in-place) ----
    out_rows = pl.pallas_call(
        _scale_shift_kernel,
        grid_spec=pltpu.PrefetchScalarGridSpec(
            num_scalar_prefetch=0,
            grid=(N, n_tiles),
            in_specs=(
                pl.BlockSpec((None, tile_l, C_out_pad), lambda n, i: (n, i, 0)),
                pl.BlockSpec((1, C_out_pad), lambda n, i: (0, 0)),
                pl.BlockSpec((1, C_out_pad), lambda n, i: (0, 0)),
            ),
            out_specs=pl.BlockSpec((None, tile_l, C_out_pad), lambda n, i: (n, i, 0)),
        ),
        out_shape=jax.ShapeDtypeStruct((N, Lt, C_out_pad), jnp.float32),
        input_output_aliases={0: 0},                  # write back in place over y
        compiler_params=pltpu.CompilerParams(
            dimension_semantics=("parallel", "parallel"),
            vmem_limit_bytes=vmem_limit,
        ),
        cost_estimate=cost2,
    )(y, scale, shift)

    # --- glue back to PyTorch NCL layout, drop row / lane padding ---
    return out_rows[:, :L, :C_out].transpose(0, 2, 1)


# --------------------------------------------------------------------------
# Init + reference
# --------------------------------------------------------------------------
def init_params(key, in_channels, out_channels, kernel_size):
    """Parameter init matching CNBN.__init__ (xavier_uniform weight with
    gain('linear')=1, default Conv1d bias, BatchNorm1d gamma=1 / beta=0)."""
    k_w, k_b = jax.random.split(key)
    fan_in = in_channels * kernel_size
    fan_out = out_channels * kernel_size
    bound = (6.0 / (fan_in + fan_out)) ** 0.5
    weight = jax.random.uniform(
        k_w, (out_channels, in_channels, kernel_size),
        minval=-bound, maxval=bound, dtype=jnp.float32)
    b_bound = 1.0 / (fan_in ** 0.5)
    bias = jax.random.uniform(
        k_b, (out_channels,), minval=-b_bound, maxval=b_bound, dtype=jnp.float32)
    gamma = jnp.ones((out_channels,), jnp.float32)
    beta = jnp.zeros((out_channels,), jnp.float32)
    return weight, bias, gamma, beta


def _reference(x, weight, bias, gamma, beta, kernel_size):
    """Pure-JAX reference (conv with bf16 inputs like the kernel's MXU path,
    f32 accumulation and f32 BN; conv bias applied — it cancels under BN)."""
    pad = (kernel_size - 1) // 2
    y = jax.lax.conv_general_dilated(
        x.astype(jnp.bfloat16), weight.astype(jnp.bfloat16),
        window_strides=(1,), padding=[(pad, pad)],
        dimension_numbers=("NCH", "OIH", "NCH"),
        preferred_element_type=jnp.float32)
    y = y + bias[None, :, None]
    mean = jnp.mean(y, axis=(0, 2), keepdims=True)
    var = jnp.mean((y - mean) ** 2, axis=(0, 2), keepdims=True)
    return ((y - mean) * jax.lax.rsqrt(var + _BN_EPS)
            * gamma[None, :, None] + beta[None, :, None])


if __name__ == "__main__":
    key = jax.random.PRNGKey(0)
    kA_x, kA_p, kB_x, kB_p, kB_g, kB_b = jax.random.split(key, 6)

    # Config A: exercises multi-tile grid + partial-tile row masking (L % tile != 0).
    N, C_in, C_out, L, K = 2, 4, 8, 20, 3
    x = jax.random.normal(kA_x, (N, C_in, L), dtype=jnp.float32)
    weight, bias, gamma, beta = init_params(kA_p, C_in, C_out, K)
    out = jax.block_until_ready(
        cnbn_forward(x, weight, bias, gamma, beta, kernel_size=K, tile_l=8))
    ref = _reference(x, weight, bias, gamma, beta, K)
    assert out.shape == (N, C_out, L)
    assert jnp.allclose(out, ref, atol=2e-3, rtol=2e-3), "config A mismatch vs reference"

    # Config B: larger kernel / channels, default (single-tile) path, non-trivial BN params.
    N, C_in, C_out, L, K = 2, 8, 16, 16, 5
    x = jax.random.normal(kB_x, (N, C_in, L), dtype=jnp.float32)
    weight, bias, _, _ = init_params(kB_p, C_in, C_out, K)
    gamma = 1.0 + 0.1 * jax.random.normal(kB_g, (C_out,), dtype=jnp.float32)
    beta = 0.1 * jax.random.normal(kB_b, (C_out,), dtype=jnp.float32)
    out = jax.block_until_ready(
        cnbn_forward(x, weight, bias, gamma, beta, kernel_size=K))
    ref = _reference(x, weight, bias, gamma, beta, K)
    assert out.shape == (N, C_out, L)
    assert jnp.allclose(out, ref, atol=2e-3, rtol=2e-3), "config B mismatch vs reference"

    print("KERNEL_OK")
</pallas_src>

<mosaic_0001>
module attributes {stable_mosaic.version = 11 : i64} {
  func.func @_conv_stats_kernel(%arg0: i32, %arg1: i32, %arg2: memref<1x32x4xbf16, #tpu.memory_space<vmem>>, %arg3: memref<3x4x128xbf16, #tpu.memory_space<vmem>>, %arg4: memref<1x8x128xf32, #tpu.memory_space<vmem>>, %arg5: memref<1x1x128xf32, #tpu.memory_space<vmem>>, %arg6: memref<1x1x128xf32, #tpu.memory_space<vmem>>) attributes {dimension_semantics = [#tpu.dimension_semantics<parallel>, #tpu.dimension_semantics<arbitrary>], iteration_bounds = array<i64: 2, 3>, scalar_prefetch = 0 : i64, scratch_operands = 0 : i64, tpu.core_type = #tpu.core_type<tc>, window_params = [{transform_indices = @transform_0, window_bounds = array<i64: 1, 32, 4>}, {pipeline_mode = #tpu.pipeline_mode<synchronous>, transform_indices = @transform_1, window_bounds = array<i64: 3, 4, 128>}, {transform_indices = @transform_2, window_bounds = array<i64: 1, 8, 128>}, {transform_indices = @transform_3, window_bounds = array<i64: 1, 1, 128>}, {transform_indices = @transform_4, window_bounds = array<i64: 1, 1, 128>}]} {
    %c0_i32 = arith.constant 0 : i32
    %0 = arith.cmpi eq, %arg1, %c0_i32 : i32
    %1 = arith.extui %0 : i1 to i32
    %c0_i32_0 = arith.constant 0 : i32
    %2 = arith.cmpi ne, %1, %c0_i32_0 : i32
    scf.if %2 {
      %cst_30 = arith.constant 0.000000e+00 : f32
      %51 = vector.broadcast %cst_30 : f32 to vector<1x128xf32>
      %c0_31 = arith.constant 0 : index
      %c0_32 = arith.constant 0 : index
      %c0_33 = arith.constant 0 : index
      %52 = vector.load %arg5[%c0_31, %c0_32, %c0_33] : memref<1x1x128xf32, #tpu.memory_space<vmem>>, vector<1x1x128xf32>
      %53 = vector.shape_cast %52 : vector<1x1x128xf32> to vector<1x128xf32>
      %54 = vector.shape_cast %51 : vector<1x128xf32> to vector<1x1x128xf32>
      tpu.vector_store %arg5[%c0_31, %c0_32, %c0_33], %54 {strides = array<i32>} : memref<1x1x128xf32, #tpu.memory_space<vmem>>, vector<1x1x128xf32>,
      %cst_34 = arith.constant 0.000000e+00 : f32
      %55 = vector.broadcast %cst_34 : f32 to vector<1x128xf32>
      %c0_35 = arith.constant 0 : index
      %c0_36 = arith.constant 0 : index
      %c0_37 = arith.constant 0 : index
      %56 = vector.load %arg6[%c0_35, %c0_36, %c0_37] : memref<1x1x128xf32, #tpu.memory_space<vmem>>, vector<1x1x128xf32>
      %57 = vector.shape_cast %56 : vector<1x1x128xf32> to vector<1x128xf32>
      %58 = vector.shape_cast %55 : vector<1x128xf32> to vector<1x1x128xf32>
      tpu.vector_store %arg6[%c0_35, %c0_36, %c0_37], %58 {strides = array<i32>} : memref<1x1x128xf32, #tpu.memory_space<vmem>>, vector<1x1x128xf32>,
    } else {
    }
    %c8_i32 = arith.constant 8 : i32
    %3 = arith.muli %arg1, %c8_i32 : i32
    %4 = tpu.assume_multiple %3, 8 : i32
    %c0 = arith.constant 0 : index
    %5 = arith.index_cast %4 : i32 to index
    %c0_1 = arith.constant 0 : index
    %6 = vector.load %arg2[%c0, %5, %c0_1] : memref<1x32x4xbf16, #tpu.memory_space<vmem>>, vector<1x16x4xbf16>
    %7 = vector.shape_cast %6 : vector<1x16x4xbf16> to vector<16x4xbf16>
    %cst = arith.constant 0.000000e+00 : f32
    %8 = vector.broadcast %cst : f32 to vector<8x128xf32>
    %9 = vector.extract_strided_slice %7 {offsets = [0, 0], sizes = [8, 4], strides = [1, 1]} : vector<16x4xbf16> to vector<8x4xbf16>
    %c0_2 = arith.constant 0 : index
    %c0_3 = arith.constant 0 : index
    %c0_4 = arith.constant 0 : index
    %10 = vector.load %arg3[%c0_2, %c0_3, %c0_4] : memref<3x4x128xbf16, #tpu.memory_space<vmem>>, vector<1x4x128xbf16>
    %11 = vector.shape_cast %10 : vector<1x4x128xbf16> to vector<4x128xbf16>
    %cst_5 = arith.constant dense<0.000000e+00> : vector<8x128xf32>
    %12 = tpu.matmul %9, %11, %cst_5 {dimension_numbers = #tpu.dot_dimension_numbers<[1], [0], [0], [1], [0, 0, 1, 1], [], []>} : vector<8x4xbf16>, vector<4x128xbf16>, vector<8x128xf32> -> vector<8x128xf32>
    %13 = arith.addf %8, %12 : vector<8x128xf32>
    %14 = vector.extract_strided_slice %7 {offsets = [1, 0], sizes = [8, 4], strides = [1, 1]} : vector<16x4xbf16> to vector<8x4xbf16>
    %c1 = arith.constant 1 : index
    %c0_6 = arith.constant 0 : index
    %c0_7 = arith.constant 0 : index
    %15 = vector.load %arg3[%c1, %c0_6, %c0_7] : memref<3x4x128xbf16, #tpu.memory_space<vmem>>, vector<1x4x128xbf16>
    %16 = vector.shape_cast %15 : vector<1x4x128xbf16> to vector<4x128xbf16>
    %cst_8 = arith.constant dense<0.000000e+00> : vector<8x128xf32>
    %17 = tpu.matmul %14, %16, %cst_8 {dimension_numbers = #tpu.dot_dimension_numbers<[1], [0], [0], [1], [0, 0, 1, 1], [], []>} : vector<8x4xbf16>, vector<4x128xbf16>, vector<8x128xf32> -> vector<8x128xf32>
    %18 = arith.addf %13, %17 : vector<8x128xf32>
    %19 = vector.extract_strided_slice %7 {offsets = [2, 0], sizes = [8, 4], strides = [1, 1]} : vector<16x4xbf16> to vector<8x4xbf16>
    %c2 = arith.constant 2 : index
    %c0_9 = arith.constant 0 : index
    %c0_10 = arith.constant 0 : index
    %20 = vector.load %arg3[%c2, %c0_9, %c0_10] : memref<3x4x128xbf16, #tpu.memory_space<vmem>>, vector<1x4x128xbf16>
    %21 = vector.shape_cast %20 : vector<1x4x128xbf16> to vector<4x128xbf16>
    %cst_11 = arith.constant dense<0.000000e+00> : vector<8x128xf32>
    %22 = tpu.matmul %19, %21, %cst_11 {dimension_numbers = #tpu.dot_dimension_numbers<[1], [0], [0], [1], [0, 0, 1, 1], [], []>} : vector<8x4xbf16>, vector<4x128xbf16>, vector<8x128xf32> -> vector<8x128xf32>
    %23 = arith.addf %18, %22 : vector<8x128xf32>
    %c0_12 = arith.constant 0 : index
    %c0_13 = arith.constant 0 : index
    %c0_14 = arith.constant 0 : index
    %24 = vector.load %arg4[%c0_12, %c0_13, %c0_14] : memref<1x8x128xf32, #tpu.memory_space<vmem>>, vector<1x8x128xf32>
    %25 = vector.shape_cast %24 : vector<1x8x128xf32> to vector<8x128xf32>
    %26 = vector.shape_cast %23 : vector<8x128xf32> to vector<1x8x128xf32>
    tpu.vector_store %arg4[%c0_12, %c0_13, %c0_14], %26 {strides = array<i32>} : memref<1x8x128xf32, #tpu.memory_space<vmem>>, vector<1x8x128xf32>,
    %27 = tpu.iota {dimensions = array<i32: 0>} : vector<8x128xi32>
    %28 = vector.broadcast %4 : i32 to vector<8x128xi32>
    %29 = arith.addi %27, %28 : vector<8x128xi32>
    %c20_i32 = arith.constant 20 : i32
    %30 = vector.broadcast %c20_i32 : i32 to vector<8x128xi32>
    %31 = arith.cmpi slt, %29, %30 : vector<8x128xi32>
    %cst_15 = arith.constant 0.000000e+00 : f32
    %32 = vector.broadcast %cst_15 : f32 to vector<8x128xf32>
    %33 = arith.select %31, %23, %32 : vector<8x128xi1>, vector<8x128xf32>
    %c0_16 = arith.constant 0 : index
    %c0_17 = arith.constant 0 : index
    %c0_18 = arith.constant 0 : index
    %34 = vector.load %arg5[%c0_16, %c0_17, %c0_18] : memref<1x1x128xf32, #tpu.memory_space<vmem>>, vector<1x1x128xf32>
    %35 = vector.shape_cast %34 : vector<1x1x128xf32> to vector<1x128xf32>
    %cst_19 = arith.constant dense<0.000000e+00> : vector<128xf32>
    %36 = vector.multi_reduction <add>, %33, %cst_19 [0] : vector<8x128xf32> to vector<128xf32>
    %37 = vector.shape_cast %36 : vector<128xf32> to vector<1x128xf32>
    %38 = arith.addf %35, %37 : vector<1x128xf32>
    %c0_20 = arith.constant 0 : index
    %c0_21 = arith.constant 0 : index
    %c0_22 = arith.constant 0 : index
    %39 = vector.load %arg5[%c0_20, %c0_21, %c0_22] : memref<1x1x128xf32, #tpu.memory_space<vmem>>, vector<1x1x128xf32>
    %40 = vector.shape_cast %39 : vector<1x1x128xf32> to vector<1x128xf32>
    %41 = vector.shape_cast %38 : vector<1x128xf32> to vector<1x1x128xf32>
    tpu.vector_store %arg5[%c0_20, %c0_21, %c0_22], %41 {strides = array<i32>} : memref<1x1x128xf32, #tpu.memory_space<vmem>>, vector<1x1x128xf32>,
    %c0_23 = arith.constant 0 : index
    %c0_24 = arith.constant 0 : index
    %c0_25 = arith.constant 0 : index
    %42 = vector.load %arg6[%c0_23, %c0_24, %c0_25] : memref<1x1x128xf32, #tpu.memory_space<vmem>>, vector<1x1x128xf32>
    %43 = vector.shape_cast %42 : vector<1x1x128xf32> to vector<1x128xf32>
    %44 = arith.mulf %33, %33 : vector<8x128xf32>
    %cst_26 = arith.constant dense<0.000000e+00> : vector<128xf32>
    %45 = vector.multi_reduction <add>, %44, %cst_26 [0] : vector<8x128xf32> to vector<128xf32>
    %46 = vector.shape_cast %45 : vector<128xf32> to vector<1x128xf32>
    %47 = arith.addf %43, %46 : vector<1x128xf32>
    %c0_27 = arith.constant 0 : index
    %c0_28 = arith.constant 0 : index
    %c0_29 = arith.constant 0 : index
    %48 = vector.load %arg6[%c0_27, %c0_28, %c0_29] : memref<1x1x128xf32, #tpu.memory_space<vmem>>, vector<1x1x128xf32>
    %49 = vector.shape_cast %48 : vector<1x1x128xf32> to vector<1x128xf32>
    %50 = vector.shape_cast %47 : vector<1x128xf32> to vector<1x1x128xf32>
    tpu.vector_store %arg6[%c0_27, %c0_28, %c0_29], %50 {strides = array<i32>} : memref<1x1x128xf32, #tpu.memory_space<vmem>>, vector<1x1x128xf32>,
    return
  }
  func.func @transform_0(%arg0: i32, %arg1: i32) -> (i32, i32, i32) {
    %c0_i32 = arith.constant 0 : i32
    %c0_i32_0 = arith.constant 0 : i32
    %c0_i32_1 = arith.constant 0 : i32
    return %arg0, %c0_i32, %c0_i32_0 : i32, i32, i32
  }
  func.func @transform_1(%arg0: i32, %arg1: i32) -> (i32, i32, i32) {
    %c0_i32 = arith.constant 0 : i32
    %c0_i32_0 = arith.constant 0 : i32
    %c0_i32_1 = arith.constant 0 : i32
    %c0_i32_2 = arith.constant 0 : i32
    return %c0_i32, %c0_i32_0, %c0_i32_1 : i32, i32, i32
  }
  func.func @transform_2(%arg0: i32, %arg1: i32) -> (i32, i32, i32) {
    %c0_i32 = arith.constant 0 : i32
    %c0_i32_0 = arith.constant 0 : i32
    return %arg0, %arg1, %c0_i32 : i32, i32, i32
  }
  func.func @transform_3(%arg0: i32, %arg1: i32) -> (i32, i32, i32) {
    %c0_i32 = arith.constant 0 : i32
    %c0_i32_0 = arith.constant 0 : i32
    %c0_i32_1 = arith.constant 0 : i32
    return %arg0, %c0_i32, %c0_i32_0 : i32, i32, i32
  }
  func.func @transform_4(%arg0: i32, %arg1: i32) -> (i32, i32, i32) {
    %c0_i32 = arith.constant 0 : i32
    %c0_i32_0 = arith.constant 0 : i32
    %c0_i32_1 = arith.constant 0 : i32
    return %arg0, %c0_i32, %c0_i32_0 : i32, i32, i32
  }
}

module attributes {stable_mosaic.version = 11 : i64} {
  func.func @_scale_shift_kernel(%arg0: i32, %arg1: i32, %arg2: memref<1x8x128xf32, #tpu.memory_space<vmem>>, %arg3: memref<1x128xf32, #tpu.memory_space<vmem>>, %arg4: memref<1x128xf32, #tpu.memory_space<vmem>>, %arg5: memref<1x8x128xf32, #tpu.memory_space<vmem>>) attributes {dimension_semantics = [#tpu.dimension_semantics<parallel>, #tpu.dimension_semantics<parallel>], iteration_bounds = array<i64: 2, 3>, scalar_prefetch = 0 : i64, scratch_operands = 0 : i64, tpu.core_type = #tpu.core_type<tc>, window_params = [{transform_indices = @transform_0, window_bounds = array<i64: 1, 8, 128>}, {pipeline_mode = #tpu.pipeline_mode<synchronous>, transform_indices = @transform_1, window_bounds = array<i64: 1, 128>}, {pipeline_mode = #tpu.pipeline_mode<synchronous>, transform_indices = @transform_2, window_bounds = array<i64: 1, 128>}, {transform_indices = @transform_3, window_bounds = array<i64: 1, 8, 128>}]} {
    %c0 = arith.constant 0 : index
    %c0_0 = arith.constant 0 : index
    %c0_1 = arith.constant 0 : index
    %0 = vector.load %arg2[%c0, %c0_0, %c0_1] : memref<1x8x128xf32, #tpu.memory_space<vmem>>, vector<1x8x128xf32>
    %1 = vector.shape_cast %0 : vector<1x8x128xf32> to vector<8x128xf32>
    %c0_2 = arith.constant 0 : index
    %c0_3 = arith.constant 0 : index
    %2 = vector.load %arg3[%c0_2, %c0_3] : memref<1x128xf32, #tpu.memory_space<vmem>>, vector<1x128xf32>
    %3 = vector.broadcast %2 : vector<1x128xf32> to vector<8x128xf32>
    %4 = arith.mulf %1, %3 : vector<8x128xf32>
    %c0_4 = arith.constant 0 : index
    %c0_5 = arith.constant 0 : index
    %5 = vector.load %arg4[%c0_4, %c0_5] : memref<1x128xf32, #tpu.memory_space<vmem>>, vector<1x128xf32>
    %6 = vector.broadcast %5 : vector<1x128xf32> to vector<8x128xf32>
    %7 = arith.addf %4, %6 : vector<8x128xf32>
    %c0_6 = arith.constant 0 : index
    %c0_7 = arith.constant 0 : index
    %c0_8 = arith.constant 0 : index
    %8 = vector.load %arg5[%c0_6, %c0_7, %c0_8] : memref<1x8x128xf32, #tpu.memory_space<vmem>>, vector<1x8x128xf32>
    %9 = vector.shape_cast %8 : vector<1x8x128xf32> to vector<8x128xf32>
    %10 = vector.shape_cast %7 : vector<8x128xf32> to vector<1x8x128xf32>
    tpu.vector_store %arg5[%c0_6, %c0_7, %c0_8], %10 {strides = array<i32>} : memref<1x8x128xf32, #tpu.memory_space<vmem>>, vector<1x8x128xf32>,
    return
  }
  func.func @transform_0(%arg0: i32, %arg1: i32) -> (i32, i32, i32) {
    %c0_i32 = arith.constant 0 : i32
    %c0_i32_0 = arith.constant 0 : i32
    return %arg0, %arg1, %c0_i32 : i32, i32, i32
  }
  func.func @transform_1(%arg0: i32, %arg1: i32) -> (i32, i32) {
    %c0_i32 = arith.constant 0 : i32
    %c0_i32_0 = arith.constant 0 : i32
    %c0_i32_1 = arith.constant 0 : i32
    return %c0_i32, %c0_i32_0 : i32, i32
  }
  func.func @transform_2(%arg0: i32, %arg1: i32) -> (i32, i32) {
    %c0_i32 = arith.constant 0 : i32
    %c0_i32_0 = arith.constant 0 : i32
    %c0_i32_1 = arith.constant 0 : i32
    return %c0_i32, %c0_i32_0 : i32, i32
  }
  func.func @transform_3(%arg0: i32, %arg1: i32) -> (i32, i32, i32) {
    %c0_i32 = arith.constant 0 : i32
    %c0_i32_0 = arith.constant 0 : i32
    return %arg0, %arg1, %c0_i32 : i32, i32, i32
  }
}

</mosaic_0001>

<llo_original>
// kernel: cnbn_forward.3
$region0: #{cnbn_forward.3}
  #allocation0 [shape = 'u32[]', space=smem, size = 0x4, offset = 0x4, fixed_abs, tag = 'smem constant byte address 0x4 - core index']
  #allocation1 [shape = 'u32[72,128]{1,0:T(1,128)}', space=vmem, size = 0x9000, scoped, tag = 'internal scratch']
  %s0 = inlined_call_operand.vmem [shape: f32[2,24,128], index: 0, kind: input, shape index: {}, may-alias: {0,3}]
  %s1 = inlined_call_operand.vmem [shape: f32[1,128], index: 1, kind: input, shape index: {}]
  %s2 = inlined_call_operand.vmem [shape: f32[1,128], index: 2, kind: input, shape index: {}]
  %s3 = inlined_call_operand.vmem [shape: f32[2,24,128], index: 3, kind: output, shape index: {}, may-alias: {0,3}]
  %s4 = sld [smem:[#allocation0]]
  $region45: #{cnbn_forward.3} parent=0
    _
  %s6 = ssub.s32 1, %s4
  %s7 = scalar_select 0, %s6, %s4
  loop: start=0, step=1, limit=8
  $region2: #{cnbn_forward.3} parent=0 // loop_pre_header
    _
  $region3: #{cnbn_forward.3} parent=0 // loop_header
    %s9 = sphi 0, %s13
    %p10 = scmp.ge.s32.totalorder %s9, 8
    %s16 = sphi 0, %s28
    %s17 = sphi 0, %s24
    %s18 = sphi 0, %s16
    %s19 = sphi 0, %s17
    %s20 = sphi 0, %s18
    %s21 = sphi 0, %s19
    %s33 = sphi 0, %s35
    %s36 = sphi 0, %s33
    %s37 = sphi 0, %s36
    %s53 = sphi 0, %s37
    %s57 = sphi 0, %s57
    %s59 = sphi 0, %s57
    %s60 = sphi 0, %s59
    %s74 = sphi 0, %s60
    %s78 = sphi 0, %s78
    %s80 = sphi 0, %s78
    %s81 = sphi 0, %s80
    %s95 = sphi 0, %s81
    %s103 = sphi 0, %s105
    %s106 = sphi 0, %s103
    %s107 = sphi 0, %s106
    %s123 = sphi 0, %s107
  $region4: #{cnbn_forward.3} parent=0 // loop_header_branch
    %12 = sbr.rel (%p10) target = $region8
  $region5: #{cnbn_forward.3} parent=0 // loop_body
    %s14 = ssub.s32 %s9, 1
    %s15 = ssub.s32 %s9, 2
    %s22 = sadd.s32 1, %s17
    %p23 = scmp.ge.s32.totalorder %s22, 3
    %s24 = scalar_select %p23, 0, %s22
    %s25 = sadd.s32 1, %s16
    %s26 = scalar_select %p23, %s25, %s16
    %p27 = scmp.ge.s32.totalorder %s26, 2
    %s28 = scalar_select %p27, 0, %s26
    %s29 = ssub.s32 %s16, %s28
    %s30 = ssub.s32 %s17, %s24
    %s31 = sor.u32 %s29, %s30
    %p32 = scmp.eq.s32.totalorder %s31, 0
    %s34 = sadd.s32 %s33, 1
    %s35 = scalar_select %p32, %s33, %s34
    %p38 = pneg %p32
    %p39 = scmp.eq.s32.totalorder %s9, 5
    %p40 = por %p38, %p39
    %p41 = scmp.ne.s32.totalorder %s33, %s36
    %p42 = scmp.eq.s32.totalorder %s9, 0
    %p43 = por %p41, %p42
    %p44 = scmp.ne.s32.totalorder %s33, %s36
    %p45 = scmp.eq.s32.totalorder %s14, 5
    %p46 = por %p44, %p45
    %p47 = scmp.ne.s32.totalorder %s36, %s37
    %p48 = scmp.eq.s32.totalorder %s14, 0
    %p49 = por %p47, %p48
    %p50 = scmp.ne.s32.totalorder %s36, %s37
    %p51 = scmp.eq.s32.totalorder %s15, 5
    %p52 = por %p50, %p51
    %p54 = scmp.ne.s32.totalorder %s37, %s53
    %p55 = scmp.eq.s32.totalorder %s15, 0
    %p56 = por %p54, %p55
    %s58 = sadd.s32 %s57, 1
    %p61 = scmp.eq.s32.totalorder %s9, 5
    %p62 = scmp.ne.s32.totalorder %s57, %s59
    %p63 = scmp.eq.s32.totalorder %s9, 0
    %p64 = por %p62, %p63
    %p65 = scmp.ne.s32.totalorder %s57, %s59
    %p66 = scmp.eq.s32.totalorder %s14, 5
    %p67 = por %p65, %p66
    %p68 = scmp.ne.s32.totalorder %s59, %s60
    %p69 = scmp.eq.s32.totalorder %s14, 0
    %p70 = por %p68, %p69
    %p71 = scmp.ne.s32.totalorder %s59, %s60
    %p72 = scmp.eq.s32.totalorder %s15, 5
    %p73 = por %p71, %p72
    %p75 = scmp.ne.s32.totalorder %s60, %s74
    %p76 = scmp.eq.s32.totalorder %s15, 0
    %p77 = por %p75, %p76
    %s79 = sadd.s32 %s78, 1
    %p82 = scmp.eq.s32.totalorder %s9, 5
    %p83 = scmp.ne.s32.totalorder %s78, %s80
    %p84 = scmp.eq.s32.totalorder %s9, 0
    %p85 = por %p83, %p84
    %p86 = scmp.ne.s32.totalorder %s78, %s80
    %p87 = scmp.eq.s32.totalorder %s14, 5
    %p88 = por %p86, %p87
    %p89 = scmp.ne.s32.totalorder %s80, %s81
    %p90 = scmp.eq.s32.totalorder %s14, 0
    %p91 = por %p89, %p90
    %p92 = scmp.ne.s32.totalorder %s80, %s81
    %p93 = scmp.eq.s32.totalorder %s15, 5
    %p94 = por %p92, %p93
    %p96 = scmp.ne.s32.totalorder %s81, %s95
    %p97 = scmp.eq.s32.totalorder %s15, 0
    %p98 = por %p96, %p97
    %s99 = ssub.s32 %s16, %s28
    %s100 = ssub.s32 %s17, %s24
    %s101 = sor.u32 %s99, %s100
    %p102 = scmp.eq.s32.totalorder %s101, 0
    %s104 = sadd.s32 %s103, 1
    %s105 = scalar_select %p102, %s103, %s104
    %p108 = pneg %p102
    %p109 = scmp.eq.s32.totalorder %s9, 5
    %p110 = por %p108, %p109
    %p111 = scmp.ne.s32.totalorder %s103, %s106
    %p112 = scmp.eq.s32.totalorder %s9, 0
    %p113 = por %p111, %p112
    %p114 = scmp.ne.s32.totalorder %s103, %s106
    %p115 = scmp.eq.s32.totalorder %s14, 5
    %p116 = por %p114, %p115
    %p117 = scmp.ne.s32.totalorder %s106, %s107
    %p118 = scmp.eq.s32.totalorder %s14, 0
    %p119 = por %p117, %p118
    %p120 = scmp.ne.s32.totalorder %s106, %s107
    %p121 = scmp.eq.s32.totalorder %s15, 5
    %p122 = por %p120, %p121
    %p124 = scmp.ne.s32.totalorder %s107, %s123
    %p125 = scmp.eq.s32.totalorder %s15, 0
    %p126 = por %p124, %p125
    %p127 = scmp.le.s32.totalorder 1, %s9
    %p128 = scmp.lt.s32.totalorder %s9, 7
    %p129 = pnand %p127, %p128
    %p130 = pneg %p129
    // Predicated region
    $region9: #{cnbn_forward.3} parent=5 // pred_check
      _
    $region10: #{cnbn_forward.3} parent=5 // pred_check_branch
      %132 = sbr.rel (%p129) target = $region12
    $region11: #{cnbn_forward.3} parent=5 // pred_region
      %s133 = ssub.s32 %s9, 1
      // Predicated region
      $region13: #{cnbn_forward.3} parent=11 // pred_check
        %p134 = pneg %p70
      $region14: #{cnbn_forward.3} parent=11 // pred_check_branch
        %136 = sbr.rel (%p134) target = $region16
      $region15: #{cnbn_forward.3} parent=11 // pred_region
        _
      $region16: #{cnbn_forward.3} parent=11 // pred_fallthru
        _
      // Predicated region
      $region17: #{cnbn_forward.3} parent=11 // pred_check
        %p137 = pneg %p91
      $region18: #{cnbn_forward.3} parent=11 // pred_check_branch
        %139 = sbr.rel (%p137) target = $region20
      $region19: #{cnbn_forward.3} parent=11 // pred_region
        _
      $region20: #{cnbn_forward.3} parent=11 // pred_fallthru
        _
    $region12: #{cnbn_forward.3} parent=5 // pred_fallthru
      _
    %p140 = scmp.lt.s32.totalorder %s9, 6
    // Predicated region
    $region21: #{cnbn_forward.3} parent=5 // pred_check
      %p141 = pneg %p140
    $region22: #{cnbn_forward.3} parent=5 // pred_check_branch
      %143 = sbr.rel (%p141) target = $region24
    $region23: #{cnbn_forward.3} parent=5 // pred_region
      // Predicated region
      $region25: #{cnbn_forward.3} parent=23 // pred_check
        %p144 = pneg %p43
      $region26: #{cnbn_forward.3} parent=23 // pred_check_branch
        %146 = sbr.rel (%p144) target = $region28
      $region27: #{cnbn_forward.3} parent=23 // pred_region
        %p147 = scmp.lt.s32.totalorder %s16, 1
        %s148 = scalar_select %p147, %s16, 1
        %p149 = scmp.lt.s32.totalorder %s17, 2
        %s150 = scalar_select %p149, %s17, 2
        %s151 = smul.addr %s148, 3
        %s152 = sadd.s32 %s150, %s151
        %s153 = smul.addr %s152, 8
        %s154 = scalar_lea.vmem %s0, %s153
      $region28: #{cnbn_forward.3} parent=23 // pred_fallthru
        _
    $region24: #{cnbn_forward.3} parent=5 // pred_fallthru
      _
    %p155 = scmp.le.s32.totalorder 1, %s9
    %p156 = scmp.lt.s32.totalorder %s9, 7
    %p157 = pnand %p155, %p156
    %p158 = pneg %p157
    // Predicated region
    $region29: #{cnbn_forward.3} parent=5 // pred_check
      _
    $region30: #{cnbn_forward.3} parent=5 // pred_check_branch
      %160 = sbr.rel (%p157) target = $region32
    $region31: #{cnbn_forward.3} parent=5 // pred_region
      %s161 = ssub.s32 %s9, 1
      %p162 = scmp.lt.s32.totalorder %s18, 1
      %s163 = scalar_select %p162, %s18, 1
      %p164 = scmp.lt.s32.totalorder %s19, 2
      %s165 = scalar_select %p164, %s19, 2
      %s166 = smul.addr %s163, 3
      %s167 = sadd.s32 %s165, %s166
      %s168 = smul.addr %s167, 8
      %s169 = scalar_lea.vmem %s0, %s168
      %p170 = pneg %p49
      %p171 = pneg %p46
      %p172 = pneg %p70
      %p173 = pneg %p67
      %p174 = pneg %p91
      %p175 = pneg %p88
      %p176 = pneg %p119
      %p177 = pneg %p116
      %p178 = scmp.lt.s32.totalorder %s18, 1
      %s179 = scalar_select %p178, %s18, 1
      %p180 = scmp.lt.s32.totalorder %s19, 2
      %s181 = scalar_select %p180, %s19, 2
      %s182 = smul.addr %s179, 3
      %s183 = sadd.s32 %s181, %s182
      %s184 = smul.addr %s183, 8
      %s185 = scalar_lea.vmem %s3, %s184
      %p186 = scmp.lt.s32.totalorder %s18, 1
      %s187 = scalar_select %p186, %s18, 1
      %p188 = scmp.lt.s32.totalorder %s19, 2
      %s189 = scalar_select %p188, %s19, 2
      %s190 = smul.addr %s187, 3
      %s191 = sadd.s32 %s189, %s190
      %s192 = smul.addr %s191, 8
      %s193 = scalar_lea.vmem %s0, %s192
      %p194 = scmp.lt.s32.totalorder %s18, 1
      %s195 = scalar_select %p194, %s18, 1
      %p196 = scmp.lt.s32.totalorder %s19, 2
      %s197 = scalar_select %p196, %s19, 2
      %s198 = smul.addr %s195, 3
      %s199 = sadd.s32 %s197, %s198
      %s200 = smul.addr %s199, 8
      %s201 = scalar_lea.vmem %s3, %s200
      %v202 = vld [vmem:[%s193] sm:$0xff]
      %v203 = vld [vmem:[%s1] sm:$0x1]
      %v205 = vperm.slane %v203, 0
      %v207 = vmul.f32 %v202, %v205
      %v208 = vld [vmem:[%s2] sm:$0x1]
      %v210 = vperm.slane %v208, 0
      %v212 = vadd.f32 %v207, %v210
      %213 = vst [vmem:[%s201] sm:$0xff] %v212
      %p214 = scmp.lt.s32.totalorder %s18, 1
      %s215 = scalar_select %p214, %s18, 1
      %p216 = scmp.lt.s32.totalorder %s19, 2
      %s217 = scalar_select %p216, %s19, 2
      %s218 = smul.addr %s215, 3
      %s219 = sadd.s32 %s217, %s218
      %s220 = smul.addr %s219, 8
      %s221 = scalar_lea.vmem %s3, %s220
      // Predicated region
      $region33: #{cnbn_forward.3} parent=31 // pred_check
        %p222 = pneg %p116
      $region34: #{cnbn_forward.3} parent=31 // pred_check_branch
        %224 = sbr.rel (%p222) target = $region36
      $region35: #{cnbn_forward.3} parent=31 // pred_region
        _
      $region36: #{cnbn_forward.3} parent=31 // pred_fallthru
        _
    $region32: #{cnbn_forward.3} parent=5 // pred_fallthru
      _
    %p225 = scmp.le.s32.totalorder 2, %s9
    // Predicated region
    $region37: #{cnbn_forward.3} parent=5 // pred_check
      %p226 = pneg %p225
    $region38: #{cnbn_forward.3} parent=5 // pred_check_branch
      %228 = sbr.rel (%p226) target = $region40
    $region39: #{cnbn_forward.3} parent=5 // pred_region
      %s229 = ssub.s32 %s9, 2
      // Predicated region
      $region41: #{cnbn_forward.3} parent=39 // pred_check
        %p230 = pneg %p122
      $region42: #{cnbn_forward.3} parent=39 // pred_check_branch
        %232 = sbr.rel (%p230) target = $region44
      $region43: #{cnbn_forward.3} parent=39 // pred_region
        %p233 = scmp.lt.s32.totalorder %s20, 1
        %s234 = scalar_select %p233, %s20, 1
        %p235 = scmp.lt.s32.totalorder %s21, 2
        %s236 = scalar_select %p235, %s21, 2
        %s237 = smul.addr %s234, 3
        %s238 = sadd.s32 %s236, %s237
        %s239 = smul.addr %s238, 8
        %s240 = scalar_lea.vmem %s3, %s239
      $region44: #{cnbn_forward.3} parent=39 // pred_fallthru
        _
    $region40: #{cnbn_forward.3} parent=5 // pred_fallthru
      _
  $region6: #{cnbn_forward.3} parent=0 // loop_footer
    %s13 = sadd.s32 1, %s9
  $region7: #{cnbn_forward.3} parent=0 // loop_footer_branch
    %8 = sbr.rel target = $region3
  $region8: #{cnbn_forward.3} parent=0 // loop_exit
    _

// kernel: cnbn_forward.2
$region0: #{cnbn_forward.2}
  #allocation0 [shape = 'u32[]', space=smem, size = 0x4, offset = 0x4, fixed_abs, tag = 'smem constant byte address 0x4 - core index']
  #allocation1 [shape = 'u32[72,128]{1,0:T(1,128)}', space=vmem, size = 0x9000, scoped, tag = 'internal scratch']
  %s0 = inlined_call_operand.vmem [shape: bf16[2,32,4], index: 0, kind: input, shape index: {}]
  %s1 = inlined_call_operand.vmem [shape: bf16[3,4,128], index: 1, kind: input, shape index: {}]
  %s2 = inlined_call_operand.vmem [shape: f32[2,24,128], index: 2, kind: output, shape index: {0}]
  %s3 = inlined_call_operand.vmem [shape: f32[2,1,128], index: 3, kind: output, shape index: {1}]
  %s4 = inlined_call_operand.vmem [shape: f32[2,1,128], index: 4, kind: output, shape index: {2}]
  %5 = xla_tuple %s2, %s3, %s4
  %s6 = sld [smem:[#allocation0]]
  $region61: #{cnbn_forward.2} parent=0
    _
  %s8 = ssub.s32 1, %s6
  %s9 = scalar_select 0, %s8, %s6
  loop: start=0, step=1, limit=8
  $region2: #{cnbn_forward.2} parent=0 // loop_pre_header
    _
  $region3: #{cnbn_forward.2} parent=0 // loop_header
    %s11 = sphi 0, %s15
    %p12 = scmp.ge.s32.totalorder %s11, 8
    %s18 = sphi 0, %s30
    %s19 = sphi 0, %s26
    %s20 = sphi 0, %s18
    %s21 = sphi 0, %s19
    %s22 = sphi 0, %s20
    %s23 = sphi 0, %s21
    %s33 = sphi 0, %s35
    %s36 = sphi 0, %s33
    %s37 = sphi 0, %s36
    %s53 = sphi 0, %s37
    %s57 = sphi 0, %s57
    %s59 = sphi 0, %s57
    %s60 = sphi 0, %s59
    %s74 = sphi 0, %s60
    %s82 = sphi 0, %s84
    %s85 = sphi 0, %s82
    %s86 = sphi 0, %s85
    %s102 = sphi 0, %s86
    %s108 = sphi 0, %s110
    %s111 = sphi 0, %s108
    %s112 = sphi 0, %s111
    %s128 = sphi 0, %s112
    %s134 = sphi 0, %s136
    %s137 = sphi 0, %s134
    %s138 = sphi 0, %s137
    %s154 = sphi 0, %s138
  $region4: #{cnbn_forward.2} parent=0 // loop_header_branch
    %14 = sbr.rel (%p12) target = $region8
  $region5: #{cnbn_forward.2} parent=0 // loop_body
    %s16 = ssub.s32 %s11, 1
    %s17 = ssub.s32 %s11, 2
    %s24 = sadd.s32 1, %s19
    %p25 = scmp.ge.s32.totalorder %s24, 3
    %s26 = scalar_select %p25, 0, %s24
    %s27 = sadd.s32 1, %s18
    %s28 = scalar_select %p25, %s27, %s18
    %p29 = scmp.ge.s32.totalorder %s28, 2
    %s30 = scalar_select %p29, 0, %s28
    %s31 = ssub.s32 %s18, %s30
    %p32 = scmp.eq.s32.totalorder %s31, 0
    %s34 = sadd.s32 %s33, 1
    %s35 = scalar_select %p32, %s33, %s34
    %p38 = pneg %p32
    %p39 = scmp.eq.s32.totalorder %s11, 5
    %p40 = por %p38, %p39
    %p41 = scmp.ne.s32.totalorder %s33, %s36
    %p42 = scmp.eq.s32.totalorder %s11, 0
    %p43 = por %p41, %p42
    %p44 = scmp.ne.s32.totalorder %s33, %s36
    %p45 = scmp.eq.s32.totalorder %s16, 5
    %p46 = por %p44, %p45
    %p47 = scmp.ne.s32.totalorder %s36, %s37
    %p48 = scmp.eq.s32.totalorder %s16, 0
    %p49 = por %p47, %p48
    %p50 = scmp.ne.s32.totalorder %s36, %s37
    %p51 = scmp.eq.s32.totalorder %s17, 5
    %p52 = por %p50, %p51
    %p54 = scmp.ne.s32.totalorder %s37, %s53
    %p55 = scmp.eq.s32.totalorder %s17, 0
    %p56 = por %p54, %p55
    %s58 = sadd.s32 %s57, 1
    %p61 = scmp.eq.s32.totalorder %s11, 5
    %p62 = scmp.ne.s32.totalorder %s57, %s59
    %p63 = scmp.eq.s32.totalorder %s11, 0
    %p64 = por %p62, %p63
    %p65 = scmp.ne.s32.totalorder %s57, %s59
    %p66 = scmp.eq.s32.totalorder %s16, 5
    %p67 = por %p65, %p66
    %p68 = scmp.ne.s32.totalorder %s59, %s60
    %p69 = scmp.eq.s32.totalorder %s16, 0
    %p70 = por %p68, %p69
    %p71 = scmp.ne.s32.totalorder %s59, %s60
    %p72 = scmp.eq.s32.totalorder %s17, 5
    %p73 = por %p71, %p72
    %p75 = scmp.ne.s32.totalorder %s60, %s74
    %p76 = scmp.eq.s32.totalorder %s17, 0
    %p77 = por %p75, %p76
    %s78 = ssub.s32 %s18, %s30
    %s79 = ssub.s32 %s19, %s26
    %s80 = sor.u32 %s78, %s79
    %p81 = scmp.eq.s32.totalorder %s80, 0
    %s83 = sadd.s32 %s82, 1
    %s84 = scalar_select %p81, %s82, %s83
    %p87 = pneg %p81
    %p88 = scmp.eq.s32.totalorder %s11, 5
    %p89 = por %p87, %p88
    %p90 = scmp.ne.s32.totalorder %s82, %s85
    %p91 = scmp.eq.s32.totalorder %s11, 0
    %p92 = por %p90, %p91
    %p93 = scmp.ne.s32.totalorder %s82, %s85
    %p94 = scmp.eq.s32.totalorder %s16, 5
    %p95 = por %p93, %p94
    %p96 = scmp.ne.s32.totalorder %s85, %s86
    %p97 = scmp.eq.s32.totalorder %s16, 0
    %p98 = por %p96, %p97
    %p99 = scmp.ne.s32.totalorder %s85, %s86
    %p100 = scmp.eq.s32.totalorder %s17, 5
    %p101 = por %p99, %p100
    %p103 = scmp.ne.s32.totalorder %s86, %s102
    %p104 = scmp.eq.s32.totalorder %s17, 0
    %p105 = por %p103, %p104
    %s106 = ssub.s32 %s18, %s30
    %p107 = scmp.eq.s32.totalorder %s106, 0
    %s109 = sadd.s32 %s108, 1
    %s110 = scalar_select %p107, %s108, %s109
    %p113 = pneg %p107
    %p114 = scmp.eq.s32.totalorder %s11, 5
    %p115 = por %p113, %p114
    %p116 = scmp.ne.s32.totalorder %s108, %s111
    %p117 = scmp.eq.s32.totalorder %s11, 0
    %p118 = por %p116, %p117
    %p119 = scmp.ne.s32.totalorder %s108, %s111
    %p120 = scmp.eq.s32.totalorder %s16, 5
    %p121 = por %p119, %p120
    %p122 = scmp.ne.s32.totalorder %s111, %s112
    %p123 = scmp.eq.s32.totalorder %s16, 0
    %p124 = por %p122, %p123
    %p125 = scmp.ne.s32.totalorder %s111, %s112
    %p126 = scmp.eq.s32.totalorder %s17, 5
    %p127 = por %p125, %p126
    %p129 = scmp.ne.s32.totalorder %s112, %s128
    %p130 = scmp.eq.s32.totalorder %s17, 0
    %p131 = por %p129, %p130
    %s132 = ssub.s32 %s18, %s30
    %p133 = scmp.eq.s32.totalorder %s132, 0
    %s135 = sadd.s32 %s134, 1
    %s136 = scalar_select %p133, %s134, %s135
    %p139 = pneg %p133
    %p140 = scmp.eq.s32.totalorder %s11, 5
    %p141 = por %p139, %p140
    %p142 = scmp.ne.s32.totalorder %s134, %s137
    %p143 = scmp.eq.s32.totalorder %s11, 0
    %p144 = por %p142, %p143
    %p145 = scmp.ne.s32.totalorder %s134, %s137
    %p146 = scmp.eq.s32.totalorder %s16, 5
    %p147 = por %p145, %p146
    %p148 = scmp.ne.s32.totalorder %s137, %s138
    %p149 = scmp.eq.s32.totalorder %s16, 0
    %p150 = por %p148, %p149
    %p151 = scmp.ne.s32.totalorder %s137, %s138
    %p152 = scmp.eq.s32.totalorder %s17, 5
    %p153 = por %p151, %p152
    %p155 = scmp.ne.s32.totalorder %s138, %s154
    %p156 = scmp.eq.s32.totalorder %s17, 0
    %p157 = por %p155, %p156
    %p158 = scmp.le.s32.totalorder 1, %s11
    %p159 = scmp.lt.s32.totalorder %s11, 7
    %p160 = pnand %p158, %p159
    %p161 = pneg %p160
    // Predicated region
    $region9: #{cnbn_forward.2} parent=5 // pred_check
      _
    $region10: #{cnbn_forward.2} parent=5 // pred_check_branch
      %163 = sbr.rel (%p160) target = $region12
    $region11: #{cnbn_forward.2} parent=5 // pred_region
      %s164 = ssub.s32 %s11, 1
      // Predicated region
      $region13: #{cnbn_forward.2} parent=11 // pred_check
        %p165 = pneg %p70
      $region14: #{cnbn_forward.2} parent=11 // pred_check_branch
        %167 = sbr.rel (%p165) target = $region16
      $region15: #{cnbn_forward.2} parent=11 // pred_region
        _
      $region16: #{cnbn_forward.2} parent=11 // pred_fallthru
        _
    $region12: #{cnbn_forward.2} parent=5 // pred_fallthru
      _
    %p168 = scmp.lt.s32.totalorder %s11, 6
    // Predicated region
    $region17: #{cnbn_forward.2} parent=5 // pred_check
      %p169 = pneg %p168
    $region18: #{cnbn_forward.2} parent=5 // pred_check_branch
      %171 = sbr.rel (%p169) target = $region20
    $region19: #{cnbn_forward.2} parent=5 // pred_region
      // Predicated region
      $region21: #{cnbn_forward.2} parent=19 // pred_check
        %p172 = pneg %p43
      $region22: #{cnbn_forward.2} parent=19 // pred_check_branch
        %174 = sbr.rel (%p172) target = $region24
      $region23: #{cnbn_forward.2} parent=19 // pred_region
        %p175 = scmp.lt.s32.totalorder %s18, 1
        %s176 = scalar_select %p175, %s18, 1
        %s177 = smul.addr %s176, 4
        %s178 = smul.addr %s177, 4
        %s179 = scalar_lea.vmem %s0, %s178
      $region24: #{cnbn_forward.2} parent=19 // pred_fallthru
        _
    $region20: #{cnbn_forward.2} parent=5 // pred_fallthru
      _
    %p180 = scmp.le.s32.totalorder 1, %s11
    %p181 = scmp.lt.s32.totalorder %s11, 7
    %p182 = pnand %p180, %p181
    %p183 = pneg %p182
    // Predicated region
    $region25: #{cnbn_forward.2} parent=5 // pred_check
      _
    $region26: #{cnbn_forward.2} parent=5 // pred_check_branch
      %185 = sbr.rel (%p182) target = $region28
    $region27: #{cnbn_forward.2} parent=5 // pred_region
      %s186 = ssub.s32 %s11, 1
      %p187 = scmp.lt.s32.totalorder %s20, 1
      %s188 = scalar_select %p187, %s20, 1
      %s189 = smul.addr %s188, 4
      %s190 = smul.addr %s189, 4
      %s191 = scalar_lea.vmem %s0, %s190
      %p192 = pneg %p49
      %p193 = pneg %p46
      %p194 = pneg %p70
      %p195 = pneg %p67
      %p196 = pneg %p98
      %p197 = pneg %p95
      %p198 = scmp.lt.s32.totalorder %s20, 1
      %s199 = scalar_select %p198, %s20, 1
      %p200 = scmp.lt.s32.totalorder %s21, 2
      %s201 = scalar_select %p200, %s21, 2
      %s202 = smul.addr %s199, 3
      %s203 = sadd.s32 %s201, %s202
      %s204 = smul.addr %s203, 8
      %s205 = scalar_lea.vmem %s2, %s204
      %p206 = pneg %p124
      %p207 = pneg %p121
      %p208 = scmp.lt.s32.totalorder %s20, 1
      %s209 = scalar_select %p208, %s20, 1
      %s210 = scalar_lea.vmem %s3, %s209
      %p211 = pneg %p150
      %p212 = pneg %p147
      %p213 = scmp.lt.s32.totalorder %s20, 1
      %s214 = scalar_select %p213, %s20, 1
      %s215 = scalar_lea.vmem %s4, %s214
      %p216 = scmp.lt.s32.totalorder %s20, 1
      %s217 = scalar_select %p216, %s20, 1
      %s218 = smul.addr %s217, 4
      %s219 = smul.addr %s218, 4
      %s220 = scalar_lea.vmem %s0, %s219
      %p221 = scmp.lt.s32.totalorder %s20, 1
      %s222 = scalar_select %p221, %s20, 1
      %p223 = scmp.lt.s32.totalorder %s21, 2
      %s224 = scalar_select %p223, %s21, 2
      %s225 = smul.addr %s222, 3
      %s226 = sadd.s32 %s224, %s225
      %s227 = smul.addr %s226, 8
      %s228 = scalar_lea.vmem %s2, %s227
      %p229 = scmp.lt.s32.totalorder %s20, 1
      %s230 = scalar_select %p229, %s20, 1
      %s231 = scalar_lea.vmem %s3, %s230
      %p232 = scmp.lt.s32.totalorder %s20, 1
      %s233 = scalar_select %p232, %s20, 1
      %s234 = scalar_lea.vmem %s4, %s233
      %p236 = scmp.eq.s32.totalorder %s21, 0
      // Predicated region
      $region29: #{cnbn_forward.2} parent=27 // pred_check
        %p237 = pneg %p236
      $region30: #{cnbn_forward.2} parent=27 // pred_check_branch
        %239 = sbr.rel (%p237) target = $region32
      $region31: #{cnbn_forward.2} parent=27 // pred_region
        %240 = vst [vmem:[%s231] sm:$0x1] 0.0
        %241 = vst [vmem:[%s234] sm:$0x1] 0.0
      $region32: #{cnbn_forward.2} parent=27 // pred_fallthru
        _
      %s242 = smul.u32 %s21, 8
      %s243 = sshra.s32 %s242, 3
      %s244 = sand.u32 %s242, 7
      %s245 = smul.addr %s243, 4
      %s246 = scalar_lea.vmem %s220, %s245
      %v247 = vld [vmem:[%s246] sm:$0xf]
      %v248 = vld [vmem:[%s246 + $0x4] sm:$0xf]
      %v249 = vld [vmem:[%s1] sm:$0x3]
      %s250 = scalar_lea.vmem %s1, 2
      %v251 = vld [vmem:[%s250] sm:$0x3]
      %v254 = vunpack.c.l.b16 %v247
      %v255 = vunpack.c.l.b16 %v248
      %v256 = vpack.c.b16 %v255, %v254
      %v258 = vshrl.u32 %v256, 16
      %v260 = vshll.u32 %v256, 16
      %v262 = vrot.slane %v260, 1
      %v263 = vor.u32 %v258, %v262
      %vm264 = vcmask 31744
      %v266 = vsel %vm264, %v263, 0
      %vm268 = vcmask 1041408
      %v270 = vsel %vm268, %v251, 0
      %272 = vmatpush.bf16.msra.mxu0 0
      %273 = vmatpush.bf16.msra.mxu0 0
      %274 = vmatpush.bf16.msra.mxu0 0
      %275 = vmatpush.bf16.msra.mxu0 0
      %276 = vmatpush.bf16.msra.mxu0 0
      %277 = vmatpush.bf16.msra.mxu0 0
      %278 = vmatpush.bf16.msra.mxu0 0
      %279 = vmatpush.bf16.msra.mxu0 %v270
      %280 = vmatmul.bf16.gmra.mxu0 %v266
      %v281 = vpop.f32.mrf.mxu0
      %v282 = vadd.f32 0.0, %v281
      %v283 = vpop.f32.mrf.mxu0
      %284 = vdwg.mxu0
      %v286 = vsel %vm264, %v247, 0
      %v289 = vsel %vm268, %v249, 0
      %291 = vmatpush.bf16.msra.mxu0 0
      %292 = vmatpush.bf16.msra.mxu0 0
      %293 = vmatpush.bf16.msra.mxu0 0
      %294 = vmatpush.bf16.msra.mxu0 0
      %295 = vmatpush.bf16.msra.mxu0 0
      %296 = vmatpush.bf16.msra.mxu0 0
      %297 = vmatpush.bf16.msra.mxu0 0
      %298 = vmatpush.bf16.msra.mxu0 %v289
      %299 = vmatmul.bf16.gmra.mxu0 %v286
      %v300 = vpop.f32.mrf.mxu0
      %v301 = vadd.f32 %v282, %v300
      %v302 = vpop.f32.mrf.mxu0
      %303 = vdwg.mxu0
      %s304 = scalar_lea.vmem %s1, 4
      %v305 = vld [vmem:[%s304] sm:$0x3]
      %v306 = vrot.slane %v256, 1
      %v308 = vsel %vm264, %v306, 0
      %v311 = vsel %vm268, %v305, 0
      %313 = vmatpush.bf16.msra.mxu0 0
      %314 = vmatpush.bf16.msra.mxu0 0
      %315 = vmatpush.bf16.msra.mxu0 0
      %316 = vmatpush.bf16.msra.mxu0 0
      %317 = vmatpush.bf16.msra.mxu0 0
      %318 = vmatpush.bf16.msra.mxu0 0
      %319 = vmatpush.bf16.msra.mxu0 0
      %320 = vmatpush.bf16.msra.mxu0 %v311
      %321 = vmatmul.bf16.gmra.mxu0 %v308
      %v322 = vpop.f32.mrf.mxu0
      %v323 = vadd.f32 0.0, %v322
      %v324 = vpop.f32.mrf.mxu0
      %325 = vdwg.mxu0
      %v326 = vadd.f32 %v301, %v323
      %327 = vst [vmem:[%s228] sm:$0xff] %v326
      %v328 = vlaneseq
      %v329 = vshrl.u32 %v328, 7
      %v330 = vstv %s242
      %v331 = vadd.s32 %v329, %v330
      %vm332 = vcmp.lt.s32.totalorder %v331, 20
      %v333 = vsel %vm332, %v326, 0.0
      %v334 = vld [vmem:[%s231] sm:$0x1]
      %v335 = vrot.slane %v333, 4
      %v336 = vadd.f32 %v333, %v335
      %v337 = vrot.slane %v336, 2
      %v338 = vadd.f32 %v336, %v337
      %v339 = vrot.slane %v338, 1
      %v340 = vadd.f32 %v338, %v339
      %v341 = vadd.f32 %v334, %v340
      %342 = vst [vmem:[%s231] sm:$0x1] %v341
      %v343 = vld [vmem:[%s234] sm:$0x1]
      %v344 = vmul.f32 %v333, %v333
      %v345 = vrot.slane %v344, 4
      %v346 = vadd.f32 %v344, %v345
      %v347 = vrot.slane %v346, 2
      %v348 = vadd.f32 %v346, %v347
      %v349 = vrot.slane %v348, 1
      %v350 = vadd.f32 %v348, %v349
      %v351 = vadd.f32 %v343, %v350
      %352 = vst [vmem:[%s234] sm:$0x1] %v351
      %p353 = scmp.lt.s32.totalorder %s20, 1
      %s354 = scalar_select %p353, %s20, 1
      %p355 = scmp.lt.s32.totalorder %s21, 2
      %s356 = scalar_select %p355, %s21, 2
      %s357 = smul.addr %s354, 3
      %s358 = sadd.s32 %s356, %s357
      %s359 = smul.addr %s358, 8
      %s360 = scalar_lea.vmem %s2, %s359
      %p361 = scmp.lt.s32.totalorder %s20, 1
      %s362 = scalar_select %p361, %s20, 1
      %s363 = scalar_lea.vmem %s3, %s362
      %p364 = scmp.lt.s32.totalorder %s20, 1
      %s365 = scalar_select %p364, %s20, 1
      %s366 = scalar_lea.vmem %s4, %s365
      // Predicated region
      $region33: #{cnbn_forward.2} parent=27 // pred_check
        %p367 = pneg %p95
      $region34: #{cnbn_forward.2} parent=27 // pred_check_branch
        %369 = sbr.rel (%p367) target = $region36
      $region35: #{cnbn_forward.2} parent=27 // pred_region
        _
      $region36: #{cnbn_forward.2} parent=27 // pred_fallthru
        _
      // Predicated region
      $region37: #{cnbn_forward.2} parent=27 // pred_check
        %p370 = pneg %p121
      $region38: #{cnbn_forward.2} parent=27 // pred_check_branch
        %372 = sbr.rel (%p370) target = $region40
      $region39: #{cnbn_forward.2} parent=27 // pred_region
        _
      $region40: #{cnbn_forward.2} parent=27 // pred_fallthru
        _
      // Predicated region
      $region41: #{cnbn_forward.2} parent=27 // pred_check
        %p373 = pneg %p147
      $region42: #{cnbn_forward.2} parent=27 // pred_check_branch
        %375 = sbr.rel (%p373) target = $region44
      $region43: #{cnbn_forward.2} parent=27 // pred_region
        _
      $region44: #{cnbn_forward.2} parent=27 // pred_fallthru
        _
    $region28: #{cnbn_forward.2} parent=5 // pred_fallthru
      _
    %p376 = scmp.le.s32.totalorder 2, %s11
    // Predicated region
    $region45: #{cnbn_forward.2} parent=5 // pred_check
      %p377 = pneg %p376
    $region46: #{cnbn_forward.2} parent=5 // pred_check_branch
      %379 = sbr.rel (%p377) target = $region48
    $region47: #{cnbn_forward.2} parent=5 // pred_region
      %s380 = ssub.s32 %s11, 2
      // Predicated region
      $region49: #{cnbn_forward.2} parent=47 // pred_check
        %p381 = pneg %p101
      $region50: #{cnbn_forward.2} parent=47 // pred_check_branch
        %383 = sbr.rel (%p381) target = $region52
      $region51: #{cnbn_forward.2} parent=47 // pred_region
        %p384 = scmp.lt.s32.totalorder %s22, 1
        %s385 = scalar_select %p384, %s22, 1
        %p386 = scmp.lt.s32.totalorder %s23, 2
        %s387 = scalar_select %p386, %s23, 2
        %s388 = smul.addr %s385, 3
        %s389 = sadd.s32 %s387, %s388
        %s390 = smul.addr %s389, 8
        %s391 = scalar_lea.vmem %s2, %s390
      $region52: #{cnbn_forward.2} parent=47 // pred_fallthru
        _
      // Predicated region
      $region53: #{cnbn_forward.2} parent=47 // pred_check
        %p392 = pneg %p127
      $region54: #{cnbn_forward.2} parent=47 // pred_check_branch
        %394 = sbr.rel (%p392) target = $region56
      $region55: #{cnbn_forward.2} parent=47 // pred_region
        %p395 = scmp.lt.s32.totalorder %s22, 1
        %s396 = scalar_select %p395, %s22, 1
        %s397 = scalar_lea.vmem %s3, %s396
      $region56: #{cnbn_forward.2} parent=47 // pred_fallthru
        _
      // Predicated region
      $region57: #{cnbn_forward.2} parent=47 // pred_check
        %p398 = pneg %p153
      $region58: #{cnbn_forward.2} parent=47 // pred_check_branch
        %400 = sbr.rel (%p398) target = $region60
      $region59: #{cnbn_forward.2} parent=47 // pred_region
        %p401 = scmp.lt.s32.totalorder %s22, 1
        %s402 = scalar_select %p401, %s22, 1
        %s403 = scalar_lea.vmem %s4, %s402
      $region60: #{cnbn_forward.2} parent=47 // pred_fallthru
        _
    $region48: #{cnbn_forward.2} parent=5 // pred_fallthru
      _
  $region6: #{cnbn_forward.2} parent=0 // loop_footer
    %s15 = sadd.s32 1, %s11
  $region7: #{cnbn_forward.2} parent=0 // loop_footer_branch
    %10 = sbr.rel target = $region3
  $region8: #{cnbn_forward.2} parent=0 // loop_exit
    _

</llo_original>
